<compile_context>
chip_gen: v6e
topology: v6e:2x2x1
jax: 0.10.0
libtpu: 0.0.40
codegen_flags: <defaults>
</compile_context>

<pallas_src>
import jax
import jax.numpy as jnp
from jax.experimental import pallas as pl
from jax.experimental.pallas import tpu as pltpu

# ----- small shapes consistent with the module (scaled-down defaults) -------
B = 2                               # batch
L = 8                               # model__max_len (sequence length)
E = 32                              # model__embeddings_dim
F = 128                             # model__num_filters
FILTER_SIZES = (1, 1, 1, 2, 2, 2)   # model__filter_sizes
NUM_CLASSES = 10                    # len(self.labels)
VOCAB = 50
HIDDEN = F * len(FILTER_SIZES)      # 768 == Linear in_features
KMAX = max(FILTER_SIZES)            # 2 (conv windows per position)
N_K1 = sum(1 for k in FILTER_SIZES if k == 1) * F   # 384 columns use only window 0
VOCAB_PAD = 64                      # padded vocab (one-hot contraction dim)
C_PAD = 128                         # lane-dense classifier output width


def cnn_kernel(tok_ref, emb_ref, conv_w_ref, conv_b_ref, lin_w_ref, lin_b_ref,
               out_ref):
    """Fused one-hot gather + single conv matmul + ReLU + masked max-pool + linear."""
    BL = B * L

    # ---- embedding gather (both conv windows at once) via one-hot MXU matmul.
    tok = tok_ref[...]                                                 # (2*BL, 1) int32
    vocab_iota = jax.lax.broadcasted_iota(jnp.int32, (2 * BL, VOCAB_PAD), 1)
    onehot = jnp.where(vocab_iota == tok, 1.0, 0.0).astype(jnp.bfloat16)
    gathered = jnp.dot(onehot, emb_ref[...],
                       preferred_element_type=jnp.float32)             # (2*BL, E)

    # shifted-window slab: row l = [x(b,l,:) | x(b,l+1,:)]  -> (BL, 2E) bf16.
    slab = jnp.concatenate([gathered[:BL, :], gathered[BL:, :]],
                           axis=1).astype(jnp.bfloat16)                # (BL, KMAX*E)

    # ---- all 6 conv filters in ONE matmul (k=1 block zero-padded to 2E rows).
    conv = jnp.dot(slab, conv_w_ref[...],
                   preferred_element_type=jnp.float32)                 # (BL, 6F)
    act = jnp.maximum(conv + conv_b_ref[...], 0.0)                     # bias + ReLU, f32

    # Zero-mask the out-of-range k=2 window row (l == L-1) of each sequence.
    # Safe only because the mask is applied AFTER ReLU (activations >= 0).
    row = jax.lax.broadcasted_iota(jnp.int32, (BL, HIDDEN), 0)
    col = jax.lax.broadcasted_iota(jnp.int32, (BL, HIDDEN), 1)
    invalid = jnp.logical_and(row % L == L - 1, col >= N_K1)
    act = jnp.where(invalid, 0.0, act)

    # ---- max-over-time pooling: (BL, 6F) -> (B, L, 6F) -> (B, 6F).
    pooled = jnp.max(act.reshape(B, L, HIDDEN), axis=1)                # (B, 6F) f32

    # TODO(synk): nn.Dropout(p=0.8) is identity in eval/inference; no RNG applied.

    # ---- classifier (lane-dense: C padded to 128, sliced back in the wrapper).
    out_ref[...] = (jnp.dot(pooled.astype(jnp.bfloat16), lin_w_ref[...],
                            preferred_element_type=jnp.float32)
                    + lin_b_ref[...])                                  # (B, C_PAD)


def cnn_forward(tokens, emb_table, conv_params, lin_w, lin_b):
    """tokens (B, L) int32; emb_table (VOCAB, E) f32;
    conv_params: list of (k, W_flat(k*E, F), bias(1, F)) in FILTER_SIZES order;
    lin_w (HIDDEN, C) (transposed PyTorch weight); lin_b (1, C)."""
    tokens = tokens.astype(jnp.int32)

    # Window-0 tokens followed by window-1 (+1 shifted) tokens; the duplicated
    # last shifted token only feeds the conv row that is zero-masked anyway.
    tok_shift = jnp.concatenate([tokens[:, 1:], tokens[:, -1:]], axis=1)
    tok2 = jnp.concatenate([tokens.reshape(-1), tok_shift.reshape(-1)],
                           axis=0).reshape(2 * B * L, 1)

    # bf16 embedding table, vocab padded with zero rows (never selected).
    emb_pad = jnp.zeros((VOCAB_PAD, E), jnp.bfloat16)
    emb_pad = emb_pad.at[:VOCAB].set(emb_table.astype(jnp.bfloat16))

    # One fused conv weight (KMAX*E, 6F) / bias (1, 6F) in FILTER_SIZES order;
    # k=1 filters only see window 0 (rows E..2E zeroed).
    w_cols, b_cols = [], []
    for k, w_flat, bias in conv_params:
        wk = jnp.zeros((KMAX * E, F), jnp.float32).at[:k * E, :].set(w_flat)
        w_cols.append(wk)
        b_cols.append(bias)
    conv_w = jnp.concatenate(w_cols, axis=1).astype(jnp.bfloat16)   # (2E, 6F)
    conv_b = jnp.concatenate(b_cols, axis=1).astype(jnp.float32)    # (1, 6F)

    # Lane-dense classifier weights: pad C -> 128 so the output store is unmasked.
    lin_w_pad = jnp.zeros((HIDDEN, C_PAD), jnp.float32)
    lin_w_pad = lin_w_pad.at[:, :NUM_CLASSES].set(lin_w).astype(jnp.bfloat16)
    lin_b_pad = jnp.zeros((1, C_PAD), jnp.float32).at[:, :NUM_CLASSES].set(lin_b)

    inputs = (tok2, emb_pad, conv_w, conv_b, lin_w_pad, lin_b_pad)

    def full_spec(a):
        nd = a.ndim
        return pl.BlockSpec(a.shape, lambda i, nd=nd: (0,) * nd)

    out = pl.pallas_call(
        cnn_kernel,
        out_shape=jax.ShapeDtypeStruct((B, C_PAD), jnp.float32),
        grid=(1,),
        in_specs=[full_spec(a) for a in inputs],
        out_specs=pl.BlockSpec((B, C_PAD), lambda i: (0, 0)),
        compiler_params=pltpu.CompilerParams(
            dimension_semantics=("arbitrary",)),
    )(*inputs)
    return out[:, :NUM_CLASSES]


if __name__ == "__main__":
    key = jax.random.PRNGKey(0)
    keys = jax.random.split(key, 16)

    # Embedding table, like _init_embeddings_and_vocab: U(-0.2, 0.2).
    emb_table = jax.random.uniform(keys[0], (VOCAB, E), jnp.float32, -0.2, 0.2)

    # Conv2d(1, F, (k, E)) weights: trunc_normal(std=0.1); bias: U(+-1/sqrt(k*E)).
    conv_params = []
    for i, k in enumerate(FILTER_SIZES):
        wkey, bkey = jax.random.split(keys[1 + i])
        w = 0.1 * jax.random.truncated_normal(wkey, -2.0, 2.0, (F, k, E), jnp.float32)
        # (F, k, E) -> (k, E, F) -> (k*E, F): row dk*E+e == weight[f, 0, dk, e]
        w_flat = jnp.transpose(w, (1, 2, 0)).reshape(k * E, F)
        bound = 1.0 / float((k * E) ** 0.5)
        bias = jax.random.uniform(bkey, (1, F), jnp.float32, -bound, bound)
        conv_params.append((k, w_flat, bias))

    # Linear(768, C): trunc_normal(std=0.1) weight (passed transposed), uniform bias.
    lwkey, lbkey = jax.random.split(keys[8])
    lin_w = 0.1 * jax.random.truncated_normal(lwkey, -2.0, 2.0,
                                              (HIDDEN, NUM_CLASSES), jnp.float32)
    lbound = 1.0 / float(HIDDEN ** 0.5)
    lin_b = jax.random.uniform(lbkey, (1, NUM_CLASSES), jnp.float32, -lbound, lbound)

    # Token ids (what the PyTorch module feeds after _digitize_sents).
    tokens = jax.random.randint(keys[9], (B, L), 0, VOCAB, dtype=jnp.int32)

    out = cnn_forward(tokens, emb_table, conv_params, lin_w, lin_b)
    jax.block_until_ready(out)
    assert out.shape == (B, NUM_CLASSES)
    print("KERNEL_OK")
</pallas_src>

<mosaic_0001>
module attributes {stable_mosaic.version = 11 : i64} {
  func.func @cnn_kernel(%arg0: i32, %arg1: memref<32x1xi32, #tpu.memory_space<vmem>>, %arg2: memref<64x32xbf16, #tpu.memory_space<vmem>>, %arg3: memref<64x768xbf16, #tpu.memory_space<vmem>>, %arg4: memref<1x768xf32, #tpu.memory_space<vmem>>, %arg5: memref<768x128xbf16, #tpu.memory_space<vmem>>, %arg6: memref<1x128xf32, #tpu.memory_space<vmem>>, %arg7: memref<2x128xf32, #tpu.memory_space<vmem>>) attributes {dimension_semantics = [#tpu.dimension_semantics<arbitrary>], iteration_bounds = array<i64: 1>, scalar_prefetch = 0 : i64, scratch_operands = 0 : i64, tpu.core_type = #tpu.core_type<tc>, window_params = [{pipeline_mode = #tpu.pipeline_mode<synchronous>, transform_indices = @transform_0, window_bounds = array<i64: 32, 1>}, {pipeline_mode = #tpu.pipeline_mode<synchronous>, transform_indices = @transform_1, window_bounds = array<i64: 64, 32>}, {pipeline_mode = #tpu.pipeline_mode<synchronous>, transform_indices = @transform_2, window_bounds = array<i64: 64, 768>}, {pipeline_mode = #tpu.pipeline_mode<synchronous>, transform_indices = @transform_3, window_bounds = array<i64: 1, 768>}, {pipeline_mode = #tpu.pipeline_mode<synchronous>, transform_indices = @transform_4, window_bounds = array<i64: 768, 128>}, {pipeline_mode = #tpu.pipeline_mode<synchronous>, transform_indices = @transform_5, window_bounds = array<i64: 1, 128>}, {pipeline_mode = #tpu.pipeline_mode<synchronous>, transform_indices = @transform_6, window_bounds = array<i64: 2, 128>}]} {
    %c0 = arith.constant 0 : index
    %c0_0 = arith.constant 0 : index
    %0 = vector.load %arg1[%c0, %c0_0] : memref<32x1xi32, #tpu.memory_space<vmem>>, vector<32x1xi32>
    %1 = tpu.iota {dimensions = array<i32: 1>} : vector<32x64xi32>
    %2 = vector.broadcast %0 : vector<32x1xi32> to vector<32x64xi32>
    %3 = arith.cmpi eq, %1, %2 : vector<32x64xi32>
    %cst = arith.constant 1.000000e+00 : f32
    %cst_1 = arith.constant 0.000000e+00 : f32
    %4 = vector.broadcast %cst : f32 to vector<32x64xf32>
    %5 = vector.broadcast %cst_1 : f32 to vector<32x64xf32>
    %6 = arith.select %3, %4, %5 : vector<32x64xi1>, vector<32x64xf32>
    %7 = arith.truncf %6 : vector<32x64xf32> to vector<32x64xbf16>
    %c0_2 = arith.constant 0 : index
    %c0_3 = arith.constant 0 : index
    %8 = vector.load %arg2[%c0_2, %c0_3] : memref<64x32xbf16, #tpu.memory_space<vmem>>, vector<64x32xbf16>
    %cst_4 = arith.constant dense<0.000000e+00> : vector<32x32xf32>
    %9 = tpu.matmul %7, %8, %cst_4 {dimension_numbers = #tpu.dot_dimension_numbers<[1], [0], [0], [1], [0, 0, 1, 1], [], []>} : vector<32x64xbf16>, vector<64x32xbf16>, vector<32x32xf32> -> vector<32x32xf32>
    %10 = vector.extract_strided_slice %9 {offsets = [0, 0], sizes = [16, 32], strides = [1, 1]} : vector<32x32xf32> to vector<16x32xf32>
    %11 = vector.extract_strided_slice %9 {offsets = [16, 0], sizes = [16, 32], strides = [1, 1]} : vector<32x32xf32> to vector<16x32xf32>
    %12 = tpu.concatenate %10, %11 in 1 : vector<16x32xf32>, vector<16x32xf32> -> vector<16x64xf32>
    %13 = arith.truncf %12 : vector<16x64xf32> to vector<16x64xbf16>
    %c0_5 = arith.constant 0 : index
    %c0_6 = arith.constant 0 : index
    %14 = vector.load %arg3[%c0_5, %c0_6] : memref<64x768xbf16, #tpu.memory_space<vmem>>, vector<64x768xbf16>
    %cst_7 = arith.constant dense<0.000000e+00> : vector<16x768xf32>
    %15 = tpu.matmul %13, %14, %cst_7 {dimension_numbers = #tpu.dot_dimension_numbers<[1], [0], [0], [1], [0, 0, 1, 1], [], []>} : vector<16x64xbf16>, vector<64x768xbf16>, vector<16x768xf32> -> vector<16x768xf32>
    %c0_8 = arith.constant 0 : index
    %c0_9 = arith.constant 0 : index
    %16 = vector.load %arg4[%c0_8, %c0_9] : memref<1x768xf32, #tpu.memory_space<vmem>>, vector<1x768xf32>
    %17 = vector.broadcast %16 : vector<1x768xf32> to vector<16x768xf32>
    %18 = arith.addf %15, %17 : vector<16x768xf32>
    %cst_10 = arith.constant 0.000000e+00 : f32
    %19 = vector.broadcast %cst_10 : f32 to vector<16x768xf32>
    %20 = arith.maximumf %18, %19 : vector<16x768xf32>
    %21 = tpu.iota {dimensions = array<i32: 0>} : vector<16x768xi32>
    %22 = tpu.iota {dimensions = array<i32: 1>} : vector<16x768xi32>
    %c8_i32 = arith.constant 8 : i32
    %c0_i32 = arith.constant 0 : i32
    %23 = arith.cmpi eq, %c8_i32, %c0_i32 : i32
    %c1_i32 = arith.constant 1 : i32
    %24 = arith.select %23, %c1_i32, %c8_i32 : i32
    %25 = vector.broadcast %24 : i32 to vector<16x768xi32>
    %26 = arith.remsi %21, %25 : vector<16x768xi32>
    %c0_i32_11 = arith.constant 0 : i32
    %27 = vector.broadcast %c0_i32_11 : i32 to vector<16x768xi32>
    %28 = arith.cmpi ne, %26, %27 : vector<16x768xi32>
    %c0_i32_12 = arith.constant 0 : i32
    %29 = vector.broadcast %c0_i32_12 : i32 to vector<16x768xi32>
    %30 = arith.cmpi slt, %26, %29 : vector<16x768xi32>
    %c0_i32_13 = arith.constant 0 : i32
    %31 = arith.cmpi slt, %24, %c0_i32_13 : i32
    %32 = vector.broadcast %31 : i1 to vector<16x768xi1>
    %33 = vector.broadcast %32 : vector<16x768xi1> to vector<16x768xi1>
    %34 = arith.xori %30, %33 : vector<16x768xi1>
    %35 = arith.andi %34, %28 : vector<16x768xi1>
    %36 = vector.broadcast %24 : i32 to vector<16x768xi32>
    %37 = arith.addi %26, %36 : vector<16x768xi32>
    %38 = arith.select %35, %37, %26 : vector<16x768xi1>, vector<16x768xi32>
    %c7_i32 = arith.constant 7 : i32
    %39 = vector.broadcast %c7_i32 : i32 to vector<16x768xi32>
    %40 = arith.cmpi eq, %38, %39 : vector<16x768xi32>
    %c384_i32 = arith.constant 384 : i32
    %41 = vector.broadcast %c384_i32 : i32 to vector<16x768xi32>
    %42 = arith.cmpi sge, %22, %41 : vector<16x768xi32>
    %43 = arith.andi %40, %42 : vector<16x768xi1>
    %cst_14 = arith.constant 0.000000e+00 : f32
    %44 = vector.broadcast %cst_14 : f32 to vector<16x768xf32>
    %45 = arith.select %43, %44, %20 : vector<16x768xi1>, vector<16x768xf32>
    %46 = vector.shape_cast %45 : vector<16x768xf32> to vector<2x8x768xf32>
    %cst_15 = arith.constant dense<0xFF800000> : vector<2x768xf32>
    %47 = vector.multi_reduction <maximumf>, %46, %cst_15 [1] : vector<2x8x768xf32> to vector<2x768xf32>
    %48 = arith.truncf %47 : vector<2x768xf32> to vector<2x768xbf16>
    %c0_16 = arith.constant 0 : index
    %c0_17 = arith.constant 0 : index
    %49 = vector.load %arg5[%c0_16, %c0_17] : memref<768x128xbf16, #tpu.memory_space<vmem>>, vector<768x128xbf16>
    %cst_18 = arith.constant dense<0.000000e+00> : vector<2x128xf32>
    %50 = tpu.matmul %48, %49, %cst_18 {dimension_numbers = #tpu.dot_dimension_numbers<[1], [0], [0], [1], [0, 0, 1, 1], [], []>} : vector<2x768xbf16>, vector<768x128xbf16>, vector<2x128xf32> -> vector<2x128xf32>
    %c0_19 = arith.constant 0 : index
    %c0_20 = arith.constant 0 : index
    %51 = vector.load %arg6[%c0_19, %c0_20] : memref<1x128xf32, #tpu.memory_space<vmem>>, vector<1x128xf32>
    %52 = vector.broadcast %51 : vector<1x128xf32> to vector<2x128xf32>
    %53 = arith.addf %50, %52 : vector<2x128xf32>
    %c0_21 = arith.constant 0 : index
    %c0_22 = arith.constant 0 : index
    %54 = vector.load %arg7[%c0_21, %c0_22] : memref<2x128xf32, #tpu.memory_space<vmem>>, vector<2x128xf32>
    tpu.vector_store %arg7[%c0_21, %c0_22], %53 {strides = array<i32>} : memref<2x128xf32, #tpu.memory_space<vmem>>, vector<2x128xf32>,
    return
  }
  func.func @transform_0(%arg0: i32) -> (i32, i32) {
    %c0_i32 = arith.constant 0 : i32
    %c0_i32_0 = arith.constant 0 : i32
    %c0_i32_1 = arith.constant 0 : i32
    return %c0_i32, %c0_i32_0 : i32, i32
  }
  func.func @transform_1(%arg0: i32) -> (i32, i32) {
    %c0_i32 = arith.constant 0 : i32
    %c0_i32_0 = arith.constant 0 : i32
    %c0_i32_1 = arith.constant 0 : i32
    return %c0_i32, %c0_i32_0 : i32, i32
  }
  func.func @transform_2(%arg0: i32) -> (i32, i32) {
    %c0_i32 = arith.constant 0 : i32
    %c0_i32_0 = arith.constant 0 : i32
    %c0_i32_1 = arith.constant 0 : i32
    return %c0_i32, %c0_i32_0 : i32, i32
  }
  func.func @transform_3(%arg0: i32) -> (i32, i32) {
    %c0_i32 = arith.constant 0 : i32
    %c0_i32_0 = arith.constant 0 : i32
    %c0_i32_1 = arith.constant 0 : i32
    return %c0_i32, %c0_i32_0 : i32, i32
  }
  func.func @transform_4(%arg0: i32) -> (i32, i32) {
    %c0_i32 = arith.constant 0 : i32
    %c0_i32_0 = arith.constant 0 : i32
    %c0_i32_1 = arith.constant 0 : i32
    return %c0_i32, %c0_i32_0 : i32, i32
  }
  func.func @transform_5(%arg0: i32) -> (i32, i32) {
    %c0_i32 = arith.constant 0 : i32
    %c0_i32_0 = arith.constant 0 : i32
    %c0_i32_1 = arith.constant 0 : i32
    return %c0_i32, %c0_i32_0 : i32, i32
  }
  func.func @transform_6(%arg0: i32) -> (i32, i32) {
    %c0_i32 = arith.constant 0 : i32
    %c0_i32_0 = arith.constant 0 : i32
    %c0_i32_1 = arith.constant 0 : i32
    return %c0_i32, %c0_i32_0 : i32, i32
  }
}

</mosaic_0001>

<llo_original>
// kernel: tpu_custom_call.1
$region0: #{tpu_custom_call.1}
  #allocation0 [shape = 'u32[]', space=smem, size = 0x4, offset = 0x4, fixed_abs, tag = 'smem constant byte address 0x4 - core index']
  #allocation1 [shape = 'u32[144,128]{1,0:T(1,128)}', space=vmem, size = 0x12000, scoped, tag = 'internal scratch']
  %s0 = inlined_call_operand.vmem [shape: s32[32,1], index: 0, kind: input, shape index: {}]
  %s1 = inlined_call_operand.vmem [shape: bf16[64,32], index: 1, kind: input, shape index: {}]
  %s2 = inlined_call_operand.hbm [shape: bf16[64,768], index: 2, kind: input, shape index: {}]
  %s3 = inlined_call_operand.vmem [shape: f32[1,768], index: 3, kind: input, shape index: {}]
  %s4 = inlined_call_operand.hbm [shape: bf16[768,128], index: 4, kind: input, shape index: {}]
  %s5 = inlined_call_operand.vmem [shape: f32[1,128], index: 5, kind: input, shape index: {}]
  %s6 = inlined_call_operand.hbm [shape: f32[2,128], index: 6, kind: output, shape index: {}]
  %s7 = sld [smem:[#allocation0]]
  $region42: #{tpu_custom_call.1} parent=0
    _
  %s9 = ssub.s32 1, %s7
  %s10 = scalar_select 0, %s9, %s7
  $region1: #{tpu_custom_call.1} parent=0
    #allocation2 [shape = 'u8[98304]{0}', space=vmem, size = 0x18000, scoped, tag = 'input window, operand 2, single buffered']
    #allocation3 [shape = 's32[1]{0}', space=sflag, size = 0x4, scoped, tag = 'scoped memory for tpu_custom_call.1']
    #allocation4 [shape = 's32[1]{0}', space=sflag, size = 0x4, scoped, tag = 'scoped memory for tpu_custom_call.1']
    #allocation5 [shape = 'u8[196608]{0}', space=vmem, size = 0x30000, scoped, tag = 'input window, operand 4, single buffered']
    #allocation6 [shape = 's32[1]{0}', space=sflag, size = 0x4, scoped, tag = 'scoped memory for tpu_custom_call.1']
    #allocation7 [shape = 'u8[1024]{0}', space=vmem, size = 0x400, scoped, tag = 'output window, operand 0, single buffered']
    %11 = vsyncpa [#allocation3], 0
    %12 = vsyncpa [#allocation6], 0
    %13 = vsyncpa [#allocation4], 0
    // Predicated region
    $region2: #{tpu_custom_call.1} parent=1 // pred_check
      _
    $region3: #{tpu_custom_call.1} parent=1 // pred_check_branch
      %15 = sbr.rel (0) target = $region5
    $region4: #{tpu_custom_call.1} parent=1 // pred_region
      _
    $region5: #{tpu_custom_call.1} parent=1 // pred_fallthru
      _
    // Predicated region
    $region6: #{tpu_custom_call.1} parent=1 // pred_check
      _
    $region7: #{tpu_custom_call.1} parent=1 // pred_check_branch
      %17 = sbr.rel (0) target = $region9
    $region8: #{tpu_custom_call.1} parent=1 // pred_region
      _
    $region9: #{tpu_custom_call.1} parent=1 // pred_fallthru
      _
    // Predicated region
    $region10: #{tpu_custom_call.1} parent=1 // pred_check
      _
    $region11: #{tpu_custom_call.1} parent=1 // pred_check_branch
      %19 = sbr.rel (0) target = $region13
    $region12: #{tpu_custom_call.1} parent=1 // pred_region
      %s21 = ssub.s32 3072, 3072
      %22 = vsyncadd [#allocation3], %s21
      %s23 = sshll.u32 [#allocation2], 4
      %s24 = int_to_ptr.vmem [resolvable:$true] %s23
      %29 = dma.hbm_to_vmem [thread:$0]  %s2, 3072, %s24, [#allocation3], 384, 384, 24
    $region13: #{tpu_custom_call.1} parent=1 // pred_fallthru
      _
    // Predicated region
    $region14: #{tpu_custom_call.1} parent=1 // pred_check
      _
    $region15: #{tpu_custom_call.1} parent=1 // pred_check_branch
      %31 = sbr.rel (0) target = $region17
    $region16: #{tpu_custom_call.1} parent=1 // pred_region
      _
    $region17: #{tpu_custom_call.1} parent=1 // pred_fallthru
      _
    // Predicated region
    $region18: #{tpu_custom_call.1} parent=1 // pred_check
      _
    $region19: #{tpu_custom_call.1} parent=1 // pred_check_branch
      %33 = sbr.rel (0) target = $region21
    $region20: #{tpu_custom_call.1} parent=1 // pred_region
      %s35 = ssub.s32 6144, 6144
      %36 = vsyncadd [#allocation6], %s35
      %s37 = sshll.u32 [#allocation5], 4
      %s38 = int_to_ptr.vmem [resolvable:$true] %s37
      %43 = dma.hbm_to_vmem [thread:$0]  %s4, 6144, %s38, [#allocation6], 64, 64, 4
    $region21: #{tpu_custom_call.1} parent=1 // pred_fallthru
      _
    // Predicated region
    $region22: #{tpu_custom_call.1} parent=1 // pred_check
      _
    $region23: #{tpu_custom_call.1} parent=1 // pred_check_branch
      %45 = sbr.rel (0) target = $region25
    $region24: #{tpu_custom_call.1} parent=1 // pred_region
      _
    $region25: #{tpu_custom_call.1} parent=1 // pred_fallthru
      _
    // Predicated region
    $region26: #{tpu_custom_call.1} parent=1 // pred_check
      _
    $region27: #{tpu_custom_call.1} parent=1 // pred_check_branch
      %47 = sbr.rel (0) target = $region29
    $region28: #{tpu_custom_call.1} parent=1 // pred_region
      %48 = dma.done [#allocation3], 3072
    $region29: #{tpu_custom_call.1} parent=1 // pred_fallthru
      _
    // Predicated region
    $region30: #{tpu_custom_call.1} parent=1 // pred_check
      _
    $region31: #{tpu_custom_call.1} parent=1 // pred_check_branch
      %50 = sbr.rel (0) target = $region33
    $region32: #{tpu_custom_call.1} parent=1 // pred_region
      %51 = dma.done [#allocation6], 6144
    $region33: #{tpu_custom_call.1} parent=1 // pred_fallthru
      _
    %v53 = vld [vmem:[%s0] sm:$0xff]
    %v54 = vld [vmem:[%s0 + $0x8] sm:$0xff]
    %v55 = vld [vmem:[%s0 + $0x10] sm:$0xff]
    %v56 = vld [vmem:[%s0 + $0x18] sm:$0xff]
    %v57 = vlaneseq
    %v58 = vand.u32 %v57, 127
    %59 = vset.pattern.permute.xlu0 0
    %60 = vperm.xlu0 %59, %v53
    %v61 = vpop.permute.xlu0 %60
    %62 = vset.pattern.permute.xlu0 0
    %63 = vperm.xlu0 %62, %v54
    %v64 = vpop.permute.xlu0 %63
    %65 = vset.pattern.permute.xlu0 0
    %66 = vperm.xlu0 %65, %v55
    %v67 = vpop.permute.xlu0 %66
    %68 = vset.pattern.permute.xlu0 0
    %69 = vperm.xlu0 %68, %v56
    %v70 = vpop.permute.xlu0 %69
    %vm71 = vcmp.eq.s32.totalorder %v58, %v61
    %vm72 = vcmp.eq.s32.totalorder %v58, %v64
    %vm73 = vcmp.eq.s32.totalorder %v58, %v67
    %vm74 = vcmp.eq.s32.totalorder %v58, %v70
    %v75 = vsel %vm71, 1.0, 0.0
    %v76 = vsel %vm72, 1.0, 0.0
    %v77 = vsel %vm73, 1.0, 0.0
    %v78 = vsel %vm74, 1.0, 0.0
    %v79 = vpack.c.bf16 %v76, %v75
    %v80 = vpack.c.bf16 %v78, %v77
    %v81 = vld [vmem:[%s1] sm:$0xf]
    %v82 = vld [vmem:[%s1 + $0x4] sm:$0xf]
    %v83 = vld [vmem:[%s1 + $0x8] sm:$0xf]
    %v84 = vld [vmem:[%s1 + $0xc] sm:$0xf]
    %v85 = vld [vmem:[%s1 + $0x10] sm:$0xf]
    %v86 = vld [vmem:[%s1 + $0x14] sm:$0xf]
    %v87 = vld [vmem:[%s1 + $0x18] sm:$0xf]
    %v88 = vld [vmem:[%s1 + $0x1c] sm:$0xf]
    %v97 = vunpack.c.l.b16 %v81
    %v98 = vunpack.c.l.b16 %v82
    %v99 = vunpack.c.l.b16 %v83
    %v100 = vunpack.c.l.b16 %v84
    %v101 = vunpack.c.l.b16 %v85
    %v102 = vunpack.c.l.b16 %v86
    %v103 = vunpack.c.l.b16 %v87
    %v104 = vunpack.c.l.b16 %v88
    %v105 = vpack.c.b16 %v98, %v97
    %v106 = vpack.c.b16 %v100, %v99
    %v107 = vpack.c.b16 %v102, %v101
    %v108 = vpack.c.b16 %v104, %v103
    %vm113 = vcmask 523264
    %v115 = vsel %vm113, %v79, 0
    %v118 = vsel %vm113, %v80, 0
    %120 = vmatprep.subr.bf16.mxu0 0
    %121 = vmatpush1.bf16.msra.mxu0 0
    %122 = vmatprep.subr.bf16.mxu0 0
    %123 = vmatpush1.bf16.msra.mxu0 0
    %124 = vmatprep.subr.bf16.mxu0 0
    %125 = vmatpush1.bf16.msra.mxu0 0
    %126 = vmatprep.subr.bf16.mxu0 0
    %127 = vmatpush1.bf16.msra.mxu0 0
    %128 = vmatprep.subr.bf16.mxu0 0
    %129 = vmatpush1.bf16.msra.mxu0 %v108
    %130 = vmatprep.subr.bf16.mxu0 0
    %131 = vmatpush1.bf16.msra.mxu0 %v107
    %132 = vmatprep.subr.bf16.mxu0 0
    %133 = vmatpush1.bf16.msra.mxu0 %v106
    %134 = vmatprep.subr.bf16.mxu0 0
    %135 = vmatpush1.bf16.msra.mxu0 %v105
    %136 = vmatprep.subr.bf16.mxu0 0
    %137 = vmatpush2.bf16.msra.mxu0 0
    %138 = vmatprep.subr.bf16.mxu0 0
    %139 = vmatpush2.bf16.msra.mxu0 0
    %140 = vmatprep.subr.bf16.mxu0 0
    %141 = vmatpush2.bf16.msra.mxu0 0
    %142 = vmatprep.subr.bf16.mxu0 0
    %143 = vmatpush2.bf16.msra.mxu0 0
    %144 = vmatprep.subr.bf16.mxu0 0
    %145 = vmatpush2.bf16.msra.mxu0 0
    %146 = vmatprep.subr.bf16.mxu0 0
    %147 = vmatpush2.bf16.msra.mxu0 0
    %148 = vmatprep.subr.bf16.mxu0 0
    %149 = vmatpush2.bf16.msra.mxu0 0
    %150 = vmatprep.subr.bf16.mxu0 0
    %151 = vmatpush2.bf16.msra.mxu0 0
    %152 = vmatprep.mubr.bf16.mxu0 0
    %153 = vmatmul.mubr.bf16.gmra.mxu0 %v115
    %v154 = vpop.f32.mrf.mxu0
    %v155 = vadd.f32 0.0, %v154
    %v156 = vpop.f32.mrf.mxu0
    %v157 = vpop.f32.mrf.mxu0
    %v158 = vadd.f32 0.0, %v157
    %v159 = vpop.f32.mrf.mxu0
    %160 = vmatprep.mubr.bf16.mxu0 0
    %161 = vmatmul.mubr.bf16.gmra.mxu0 %v118
    %v162 = vpop.f32.mrf.mxu0
    %v163 = vadd.f32 0.0, %v162
    %v164 = vpop.f32.mrf.mxu0
    %v165 = vpop.f32.mrf.mxu0
    %v166 = vadd.f32 0.0, %v165
    %v167 = vpop.f32.mrf.mxu0
    %168 = vdwg.mxu0
    %171 = vrot.lane.b32.xlu0 %v163, 32
    %v172 = vpop.permute.xlu0 %171
    %173 = vrot.lane.b32.xlu0 %v166, 32
    %v174 = vpop.permute.xlu0 %173
    %vm177 = vcmask 261120
    %v178 = vsel %vm177, %v155, %v172
    %v179 = vsel %vm177, %v158, %v174
    %v180 = vpack.c.bf16 %v179, %v178
    %v181 = vld [vmem:[#allocation2] sm:$0xff]
    %v182 = vld [vmem:[#allocation2 + $0x8] sm:$0xff]
    %v183 = vld [vmem:[#allocation2 + $0x10] sm:$0xff]
    %v184 = vld [vmem:[#allocation2 + $0x18] sm:$0xff]
    %v185 = vld [vmem:[#allocation2 + $0x20] sm:$0xff]
    %v186 = vld [vmem:[#allocation2 + $0x28] sm:$0xff]
    %v187 = vld [vmem:[#allocation2 + $0x30] sm:$0xff]
    %v188 = vld [vmem:[#allocation2 + $0x38] sm:$0xff]
    %v189 = vld [vmem:[#allocation2 + $0x40] sm:$0xff]
    %v190 = vld [vmem:[#allocation2 + $0x48] sm:$0xff]
    %v191 = vld [vmem:[#allocation2 + $0x50] sm:$0xff]
    %v192 = vld [vmem:[#allocation2 + $0x58] sm:$0xff]
    %v193 = vld [vmem:[#allocation2 + $0x60] sm:$0xff]
    %v194 = vld [vmem:[#allocation2 + $0x68] sm:$0xff]
    %v195 = vld [vmem:[#allocation2 + $0x70] sm:$0xff]
    %v196 = vld [vmem:[#allocation2 + $0x78] sm:$0xff]
    %v197 = vld [vmem:[#allocation2 + $0x80] sm:$0xff]
    %v198 = vld [vmem:[#allocation2 + $0x88] sm:$0xff]
    %v199 = vld [vmem:[#allocation2 + $0x90] sm:$0xff]
    %v200 = vld [vmem:[#allocation2 + $0x98] sm:$0xff]
    %v201 = vld [vmem:[#allocation2 + $0xa0] sm:$0xff]
    %v202 = vld [vmem:[#allocation2 + $0xa8] sm:$0xff]
    %v203 = vld [vmem:[#allocation2 + $0xb0] sm:$0xff]
    %v204 = vld [vmem:[#allocation2 + $0xb8] sm:$0xff]
    %v205 = vld [vmem:[%s3] sm:$0x3f]
    %v207 = vlaneseq
    %v208 = vshrl.u32 %v207, 7
    %v209 = vsub.s32 0, %v208
    %v210 = vrot.slane %v205, %v209
    %v211 = vlaneseq
    %v212 = vshrl.u32 %v211, 7
    %v213 = vsub.s32 1, %v212
    %v214 = vrot.slane %v205, %v213
    %v215 = vlaneseq
    %v216 = vshrl.u32 %v215, 7
    %v217 = vsub.s32 2, %v216
    %v218 = vrot.slane %v205, %v217
    %v219 = vlaneseq
    %v220 = vshrl.u32 %v219, 7
    %v221 = vsub.s32 3, %v220
    %v222 = vrot.slane %v205, %v221
    %v223 = vlaneseq
    %v224 = vshrl.u32 %v223, 7
    %v225 = vsub.s32 4, %v224
    %v226 = vrot.slane %v205, %v225
    %v227 = vlaneseq
    %v228 = vshrl.u32 %v227, 7
    %v229 = vsub.s32 5, %v228
    %v230 = vrot.slane %v205, %v229
    %v261 = vunpack.c.l.b16 %v181
    %v262 = vunpack.c.h.b16 %v181
    %v263 = vunpack.c.l.b16 %v182
    %v264 = vunpack.c.h.b16 %v182
    %v265 = vunpack.c.l.b16 %v183
    %v266 = vunpack.c.h.b16 %v183
    %v267 = vunpack.c.l.b16 %v184
    %v268 = vunpack.c.h.b16 %v184
    %v269 = vunpack.c.l.b16 %v185
    %v270 = vunpack.c.h.b16 %v185
    %v271 = vunpack.c.l.b16 %v186
    %v272 = vunpack.c.h.b16 %v186
    %v273 = vunpack.c.l.b16 %v187
    %v274 = vunpack.c.h.b16 %v187
    %v275 = vunpack.c.l.b16 %v188
    %v276 = vunpack.c.h.b16 %v188
    %v277 = vunpack.c.l.b16 %v189
    %v278 = vunpack.c.h.b16 %v189
    %v279 = vunpack.c.l.b16 %v190
    %v280 = vunpack.c.h.b16 %v190
    %v281 = vunpack.c.l.b16 %v191
    %v282 = vunpack.c.h.b16 %v191
    %v283 = vunpack.c.l.b16 %v192
    %v284 = vunpack.c.h.b16 %v192
    %v285 = vunpack.c.l.b16 %v193
    %v286 = vunpack.c.h.b16 %v193
    %v287 = vunpack.c.l.b16 %v194
    %v288 = vunpack.c.h.b16 %v194
    %v289 = vunpack.c.l.b16 %v195
    %v290 = vunpack.c.h.b16 %v195
    %v291 = vunpack.c.l.b16 %v196
    %v292 = vunpack.c.h.b16 %v196
    %v293 = vunpack.c.l.b16 %v197
    %v294 = vunpack.c.h.b16 %v197
    %v295 = vunpack.c.l.b16 %v198
    %v296 = vunpack.c.h.b16 %v198
    %v297 = vunpack.c.l.b16 %v199
    %v298 = vunpack.c.h.b16 %v199
    %v299 = vunpack.c.l.b16 %v200
    %v300 = vunpack.c.h.b16 %v200
    %v301 = vunpack.c.l.b16 %v201
    %v302 = vunpack.c.h.b16 %v201
    %v303 = vunpack.c.l.b16 %v202
    %v304 = vunpack.c.h.b16 %v202
    %v305 = vunpack.c.l.b16 %v203
    %v306 = vunpack.c.h.b16 %v203
    %v307 = vunpack.c.l.b16 %v204
    %v308 = vunpack.c.h.b16 %v204
    %v309 = vpack.c.b16 %v267, %v261
    %v310 = vpack.c.b16 %v268, %v262
    %v311 = vpack.c.b16 %v269, %v263
    %v312 = vpack.c.b16 %v270, %v264
    %v313 = vpack.c.b16 %v271, %v265
    %v314 = vpack.c.b16 %v272, %v266
    %v315 = vpack.c.b16 %v279, %v273
    %v316 = vpack.c.b16 %v280, %v274
    %v317 = vpack.c.b16 %v281, %v275
    %v318 = vpack.c.b16 %v282, %v276
    %v319 = vpack.c.b16 %v283, %v277
    %v320 = vpack.c.b16 %v284, %v278
    %v321 = vpack.c.b16 %v291, %v285
    %v322 = vpack.c.b16 %v292, %v286
    %v323 = vpack.c.b16 %v293, %v287
    %v324 = vpack.c.b16 %v294, %v288
    %v325 = vpack.c.b16 %v295, %v289
    %v326 = vpack.c.b16 %v296, %v290
    %v327 = vpack.c.b16 %v303, %v297
    %v328 = vpack.c.b16 %v304, %v298
    %v329 = vpack.c.b16 %v305, %v299
    %v330 = vpack.c.b16 %v306, %v300
    %v331 = vpack.c.b16 %v307, %v301
    %v332 = vpack.c.b16 %v308, %v302
    %v358 = vsel %vm113, %v180, 0
    %360 = vmatprep.subr.bf16.mxu0 0
    %361 = vmatpush1.bf16.msra.mxu0 0
    %362 = vmatprep.subr.bf16.mxu0 0
    %363 = vmatpush1.bf16.msra.mxu0 0
    %364 = vmatprep.subr.bf16.mxu0 0
    %365 = vmatpush1.bf16.msra.mxu0 0
    %366 = vmatprep.subr.bf16.mxu0 0
    %367 = vmatpush1.bf16.msra.mxu0 0
    %368 = vmatprep.subr.bf16.mxu0 %v328
    %369 = vmatpush1.bf16.msra.mxu0 %v327
    %370 = vmatprep.subr.bf16.mxu0 %v322
    %371 = vmatpush1.bf16.msra.mxu0 %v321
    %372 = vmatprep.subr.bf16.mxu0 %v316
    %373 = vmatpush1.bf16.msra.mxu0 %v315
    %374 = vmatprep.subr.bf16.mxu0 %v310
    %375 = vmatpush1.bf16.msra.mxu0 %v309
    %376 = vmatprep.subr.bf16.mxu0 0
    %377 = vmatpush2.bf16.msra.mxu0 0
    %378 = vmatprep.subr.bf16.mxu0 0
    %379 = vmatpush2.bf16.msra.mxu0 0
    %380 = vmatprep.subr.bf16.mxu0 0
    %381 = vmatpush2.bf16.msra.mxu0 0
    %382 = vmatprep.subr.bf16.mxu0 0
    %383 = vmatpush2.bf16.msra.mxu0 0
    %384 = vmatprep.subr.bf16.mxu0 0
    %385 = vmatpush2.bf16.msra.mxu0 0
    %386 = vmatprep.subr.bf16.mxu0 0
    %387 = vmatpush2.bf16.msra.mxu0 0
    %388 = vmatprep.subr.bf16.mxu0 0
    %389 = vmatpush2.bf16.msra.mxu0 0
    %390 = vmatprep.subr.bf16.mxu0 0
    %391 = vmatpush2.bf16.msra.mxu0 0
    %392 = vmatprep.mubr.bf16.mxu0 0
    %393 = vmatmul.mubr.bf16.gmra.mxu0 %v358
    %v394 = vpop.f32.mrf.mxu0
    %v395 = vadd.f32 %v210, %v394
    %v396 = vpop.f32.mrf.mxu0
    %v397 = vadd.f32 %v214, %v396
    %v398 = vpop.f32.mrf.mxu0
    %v399 = vadd.f32 %v210, %v398
    %v400 = vpop.f32.mrf.mxu0
    %v401 = vadd.f32 %v214, %v400
    %402 = vdwg.mxu0
    %403 = vmatprep.subr.bf16.mxu0 0
    %404 = vmatpush1.bf16.msra.mxu0 0
    %405 = vmatprep.subr.bf16.mxu0 0
    %406 = vmatpush1.bf16.msra.mxu0 0
    %407 = vmatprep.subr.bf16.mxu0 0
    %408 = vmatpush1.bf16.msra.mxu0 0
    %409 = vmatprep.subr.bf16.mxu0 0
    %410 = vmatpush1.bf16.msra.mxu0 0
    %411 = vmatprep.subr.bf16.mxu0 %v330
    %412 = vmatpush1.bf16.msra.mxu0 %v329
    %413 = vmatprep.subr.bf16.mxu0 %v324
    %414 = vmatpush1.bf16.msra.mxu0 %v323
    %415 = vmatprep.subr.bf16.mxu0 %v318
    %416 = vmatpush1.bf16.msra.mxu0 %v317
    %417 = vmatprep.subr.bf16.mxu0 %v312
    %418 = vmatpush1.bf16.msra.mxu0 %v311
    %419 = vmatprep.subr.bf16.mxu0 0
    %420 = vmatpush2.bf16.msra.mxu0 0
    %421 = vmatprep.subr.bf16.mxu0 0
    %422 = vmatpush2.bf16.msra.mxu0 0
    %423 = vmatprep.subr.bf16.mxu0 0
    %424 = vmatpush2.bf16.msra.mxu0 0
    %425 = vmatprep.subr.bf16.mxu0 0
    %426 = vmatpush2.bf16.msra.mxu0 0
    %427 = vmatprep.subr.bf16.mxu0 0
    %428 = vmatpush2.bf16.msra.mxu0 0
    %429 = vmatprep.subr.bf16.mxu0 0
    %430 = vmatpush2.bf16.msra.mxu0 0
    %431 = vmatprep.subr.bf16.mxu0 0
    %432 = vmatpush2.bf16.msra.mxu0 0
    %433 = vmatprep.subr.bf16.mxu0 0
    %434 = vmatpush2.bf16.msra.mxu0 0
    %435 = vmatprep.mubr.bf16.mxu0 0
    %436 = vmatmul.mubr.bf16.gmra.mxu0 %v358
    %v437 = vpop.f32.mrf.mxu0
    %v438 = vadd.f32 %v218, %v437
    %v439 = vpop.f32.mrf.mxu0
    %v440 = vadd.f32 %v222, %v439
    %v441 = vpop.f32.mrf.mxu0
    %v442 = vadd.f32 %v218, %v441
    %v443 = vpop.f32.mrf.mxu0
    %v444 = vadd.f32 %v222, %v443
    %445 = vdwg.mxu0
    %446 = vmatprep.subr.bf16.mxu0 0
    %447 = vmatpush1.bf16.msra.mxu0 0
    %448 = vmatprep.subr.bf16.mxu0 0
    %449 = vmatpush1.bf16.msra.mxu0 0
    %450 = vmatprep.subr.bf16.mxu0 0
    %451 = vmatpush1.bf16.msra.mxu0 0
    %452 = vmatprep.subr.bf16.mxu0 0
    %453 = vmatpush1.bf16.msra.mxu0 0
    %454 = vmatprep.subr.bf16.mxu0 %v332
    %455 = vmatpush1.bf16.msra.mxu0 %v331
    %456 = vmatprep.subr.bf16.mxu0 %v326
    %457 = vmatpush1.bf16.msra.mxu0 %v325
    %458 = vmatprep.subr.bf16.mxu0 %v320
    %459 = vmatpush1.bf16.msra.mxu0 %v319
    %460 = vmatprep.subr.bf16.mxu0 %v314
    %461 = vmatpush1.bf16.msra.mxu0 %v313
    %462 = vmatprep.subr.bf16.mxu0 0
    %463 = vmatpush2.bf16.msra.mxu0 0
    %464 = vmatprep.subr.bf16.mxu0 0
    %465 = vmatpush2.bf16.msra.mxu0 0
    %466 = vmatprep.subr.bf16.mxu0 0
    %467 = vmatpush2.bf16.msra.mxu0 0
    %468 = vmatprep.subr.bf16.mxu0 0
    %469 = vmatpush2.bf16.msra.mxu0 0
    %470 = vmatprep.subr.bf16.mxu0 0
    %471 = vmatpush2.bf16.msra.mxu0 0
    %472 = vmatprep.subr.bf16.mxu0 0
    %473 = vmatpush2.bf16.msra.mxu0 0
    %474 = vmatprep.subr.bf16.mxu0 0
    %475 = vmatpush2.bf16.msra.mxu0 0
    %476 = vmatprep.subr.bf16.mxu0 0
    %477 = vmatpush2.bf16.msra.mxu0 0
    %478 = vmatprep.mubr.bf16.mxu0 0
    %479 = vmatmul.mubr.bf16.gmra.mxu0 %v358
    %v480 = vpop.f32.mrf.mxu0
    %v481 = vadd.f32 %v226, %v480
    %v482 = vpop.f32.mrf.mxu0
    %v483 = vadd.f32 %v230, %v482
    %v484 = vpop.f32.mrf.mxu0
    %v485 = vadd.f32 %v226, %v484
    %v486 = vpop.f32.mrf.mxu0
    %v487 = vadd.f32 %v230, %v486
    %488 = vdwg.mxu0
    %v489 = vmax.f32 %v395, 0.0
    %v490 = vmax.f32 %v397, 0.0
    %v491 = vmax.f32 %v438, 0.0
    %v492 = vmax.f32 %v440, 0.0
    %v493 = vmax.f32 %v481, 0.0
    %v494 = vmax.f32 %v483, 0.0
    %v495 = vmax.f32 %v399, 0.0
    %v496 = vmax.f32 %v401, 0.0
    %v497 = vmax.f32 %v442, 0.0
    %v498 = vmax.f32 %v444, 0.0
    %v499 = vmax.f32 %v485, 0.0
    %v500 = vmax.f32 %v487, 0.0
    %v501 = vlaneseq
    %v502 = vshrl.u32 %v501, 7
    %v503 = vadd.s32 %v502, 8
    %v504 = vadd.s32 %v58, 128
    %v505 = vadd.s32 %v58, 256
    %v506 = vadd.s32 %v58, 384
    %v507 = vadd.s32 %v58, 512
    %v508 = vadd.s32 %v58, 640
    %vm509 = vcmp.lt.s32.totalorder %v502, 0
    %v510 = vsub.s32 0, %v502
    %v511 = vsel %vm509, %v510, %v502
    %v512 = vshrl.u32 %v511, 3
    %v513 = vand.u32 %v511, 7
    %v514 = vsub.s32 0, %v513
    %v515 = vsel %vm509, %v514, %v513
    %vm516 = vcmp.lt.s32.totalorder %v503, 0
    %v517 = vsub.s32 0, %v503
    %v518 = vsel %vm516, %v517, %v503
    %v519 = vshrl.u32 %v518, 3
    %v520 = vand.u32 %v518, 7
    %v521 = vsub.s32 0, %v520
    %v522 = vsel %vm516, %v521, %v520
    %vm523 = vcmp.ne.s32.totalorder %v515, 0
    %vm524 = vcmp.ne.s32.totalorder %v522, 0
    %vm525 = vcmp.lt.s32.totalorder %v515, 0
    %vm526 = vcmp.lt.s32.totalorder %v522, 0
    %vm527 = vmand %vm525, %vm523
    %vm528 = vmand %vm526, %vm524
    %v529 = vadd.s32 %v515, 8
    %v530 = vadd.s32 %v522, 8
    %v531 = vsel %vm527, %v529, %v515
    %v532 = vsel %vm528, %v530, %v522
    %vm533 = vcmp.eq.s32.totalorder %v531, 7
    %vm534 = vcmp.eq.s32.totalorder %v532, 7
    %vm535 = vcmp.ge.s32.totalorder %v58, 384
    %vm536 = vcmp.ge.s32.totalorder %v504, 384
    %vm537 = vcmp.ge.s32.totalorder %v505, 384
    %vm538 = vcmp.ge.s32.totalorder %v506, 384
    %vm539 = vcmp.ge.s32.totalorder %v507, 384
    %vm540 = vcmp.ge.s32.totalorder %v508, 384
    %vm541 = vmand %vm533, %vm535
    %vm542 = vmand %vm533, %vm536
    %vm543 = vmand %vm533, %vm537
    %vm544 = vmand %vm533, %vm538
    %vm545 = vmand %vm533, %vm539
    %vm546 = vmand %vm533, %vm540
    %vm547 = vmand %vm534, %vm535
    %vm548 = vmand %vm534, %vm536
    %vm549 = vmand %vm534, %vm537
    %vm550 = vmand %vm534, %vm538
    %vm551 = vmand %vm534, %vm539
    %vm552 = vmand %vm534, %vm540
    %v553 = vsel %vm541, 0.0, %v489
    %v554 = vsel %vm542, 0.0, %v490
    %v555 = vsel %vm543, 0.0, %v491
    %v556 = vsel %vm544, 0.0, %v492
    %v557 = vsel %vm545, 0.0, %v493
    %v558 = vsel %vm546, 0.0, %v494
    %v559 = vsel %vm547, 0.0, %v495
    %v560 = vsel %vm548, 0.0, %v496
    %v561 = vsel %vm549, 0.0, %v497
    %v562 = vsel %vm550, 0.0, %v498
    %v563 = vsel %vm551, 0.0, %v499
    %v564 = vsel %vm552, 0.0, %v500
    %v565 = vrot.slane %v553, 4
    %v566 = vmax.f32 %v553, %v565
    %v567 = vrot.slane %v566, 2
    %v568 = vmax.f32 %v566, %v567
    %v569 = vrot.slane %v568, 1
    %v570 = vmax.f32 %v568, %v569
    %v571 = vrot.slane %v554, 4
    %v572 = vmax.f32 %v554, %v571
    %v573 = vrot.slane %v572, 2
    %v574 = vmax.f32 %v572, %v573
    %v575 = vrot.slane %v574, 1
    %v576 = vmax.f32 %v574, %v575
    %v577 = vrot.slane %v555, 4
    %v578 = vmax.f32 %v555, %v577
    %v579 = vrot.slane %v578, 2
    %v580 = vmax.f32 %v578, %v579
    %v581 = vrot.slane %v580, 1
    %v582 = vmax.f32 %v580, %v581
    %v583 = vrot.slane %v556, 4
    %v584 = vmax.f32 %v556, %v583
    %v585 = vrot.slane %v584, 2
    %v586 = vmax.f32 %v584, %v585
    %v587 = vrot.slane %v586, 1
    %v588 = vmax.f32 %v586, %v587
    %v589 = vrot.slane %v557, 4
    %v590 = vmax.f32 %v557, %v589
    %v591 = vrot.slane %v590, 2
    %v592 = vmax.f32 %v590, %v591
    %v593 = vrot.slane %v592, 1
    %v594 = vmax.f32 %v592, %v593
    %v595 = vrot.slane %v558, 4
    %v596 = vmax.f32 %v558, %v595
    %v597 = vrot.slane %v596, 2
    %v598 = vmax.f32 %v596, %v597
    %v599 = vrot.slane %v598, 1
    %v600 = vmax.f32 %v598, %v599
    %v601 = vrot.slane %v559, 4
    %v602 = vmax.f32 %v559, %v601
    %v603 = vrot.slane %v602, 2
    %v604 = vmax.f32 %v602, %v603
    %v605 = vrot.slane %v604, 1
    %v606 = vmax.f32 %v604, %v605
    %v607 = vrot.slane %v560, 4
    %v608 = vmax.f32 %v560, %v607
    %v609 = vrot.slane %v608, 2
    %v610 = vmax.f32 %v608, %v609
    %v611 = vrot.slane %v610, 1
    %v612 = vmax.f32 %v610, %v611
    %v613 = vrot.slane %v561, 4
    %v614 = vmax.f32 %v561, %v613
    %v615 = vrot.slane %v614, 2
    %v616 = vmax.f32 %v614, %v615
    %v617 = vrot.slane %v616, 1
    %v618 = vmax.f32 %v616, %v617
    %v619 = vrot.slane %v562, 4
    %v620 = vmax.f32 %v562, %v619
    %v621 = vrot.slane %v620, 2
    %v622 = vmax.f32 %v620, %v621
    %v623 = vrot.slane %v622, 1
    %v624 = vmax.f32 %v622, %v623
    %v625 = vrot.slane %v563, 4
    %v626 = vmax.f32 %v563, %v625
    %v627 = vrot.slane %v626, 2
    %v628 = vmax.f32 %v626, %v627
    %v629 = vrot.slane %v628, 1
    %v630 = vmax.f32 %v628, %v629
    %v631 = vrot.slane %v564, 4
    %v632 = vmax.f32 %v564, %v631
    %v633 = vrot.slane %v632, 2
    %v634 = vmax.f32 %v632, %v633
    %v635 = vrot.slane %v634, 1
    %v636 = vmax.f32 %v634, %v635
    %v637 = vpack.c.bf16 %v570, %v570
    %v638 = vpack.c.bf16 %v576, %v576
    %v639 = vpack.c.bf16 %v582, %v582
    %v640 = vpack.c.bf16 %v588, %v588
    %v641 = vpack.c.bf16 %v594, %v594
    %v642 = vpack.c.bf16 %v600, %v600
    %v643 = vpack.c.bf16 %v606, %v606
    %v644 = vpack.c.bf16 %v612, %v612
    %v645 = vpack.c.bf16 %v618, %v618
    %v646 = vpack.c.bf16 %v624, %v624
    %v647 = vpack.c.bf16 %v630, %v630
    %v648 = vpack.c.bf16 %v636, %v636
    %v649 = vld [vmem:[#allocation5] sm:$0xf]
    %v650 = vld [vmem:[#allocation5 + $0x4] sm:$0xf]
    %v651 = vld [vmem:[#allocation5 + $0x8] sm:$0xf]
    %v652 = vld [vmem:[#allocation5 + $0xc] sm:$0xf]
    %v653 = vld [vmem:[#allocation5 + $0x10] sm:$0xf]
    %v654 = vld [vmem:[#allocation5 + $0x14] sm:$0xf]
    %v655 = vld [vmem:[#allocation5 + $0x18] sm:$0xf]
    %v656 = vld [vmem:[#allocation5 + $0x1c] sm:$0xf]
    %v657 = vld [vmem:[#allocation5 + $0x20] sm:$0xf]
    %v658 = vld [vmem:[#allocation5 + $0x24] sm:$0xf]
    %v659 = vld [vmem:[#allocation5 + $0x28] sm:$0xf]
    %v660 = vld [vmem:[#allocation5 + $0x2c] sm:$0xf]
    %v661 = vld [vmem:[#allocation5 + $0x30] sm:$0xf]
    %v662 = vld [vmem:[#allocation5 + $0x34] sm:$0xf]
    %v663 = vld [vmem:[#allocation5 + $0x38] sm:$0xf]
    %v664 = vld [vmem:[#allocation5 + $0x3c] sm:$0xf]
    %v665 = vld [vmem:[#allocation5 + $0x40] sm:$0xf]
    %v666 = vld [vmem:[#allocation5 + $0x44] sm:$0xf]
    %v667 = vld [vmem:[#allocation5 + $0x48] sm:$0xf]
    %v668 = vld [vmem:[#allocation5 + $0x4c] sm:$0xf]
    %v669 = vld [vmem:[#allocation5 + $0x50] sm:$0xf]
    %v670 = vld [vmem:[#allocation5 + $0x54] sm:$0xf]
    %v671 = vld [vmem:[#allocation5 + $0x58] sm:$0xf]
    %v672 = vld [vmem:[#allocation5 + $0x5c] sm:$0xf]
    %v673 = vld [vmem:[#allocation5 + $0x60] sm:$0xf]
    %v674 = vld [vmem:[#allocation5 + $0x64] sm:$0xf]
    %v675 = vld [vmem:[#allocation5 + $0x68] sm:$0xf]
    %v676 = vld [vmem:[#allocation5 + $0x6c] sm:$0xf]
    %v677 = vld [vmem:[#allocation5 + $0x70] sm:$0xf]
    %v678 = vld [vmem:[#allocation5 + $0x74] sm:$0xf]
    %v679 = vld [vmem:[#allocation5 + $0x78] sm:$0xf]
    %v680 = vld [vmem:[#allocation5 + $0x7c] sm:$0xf]
    %v681 = vld [vmem:[#allocation5 + $0x80] sm:$0xf]
    %v682 = vld [vmem:[#allocation5 + $0x84] sm:$0xf]
    %v683 = vld [vmem:[#allocation5 + $0x88] sm:$0xf]
    %v684 = vld [vmem:[#allocation5 + $0x8c] sm:$0xf]
    %v685 = vld [vmem:[#allocation5 + $0x90] sm:$0xf]
    %v686 = vld [vmem:[#allocation5 + $0x94] sm:$0xf]
    %v687 = vld [vmem:[#allocation5 + $0x98] sm:$0xf]
    %v688 = vld [vmem:[#allocation5 + $0x9c] sm:$0xf]
    %v689 = vld [vmem:[#allocation5 + $0xa0] sm:$0xf]
    %v690 = vld [vmem:[#allocation5 + $0xa4] sm:$0xf]
    %v691 = vld [vmem:[#allocation5 + $0xa8] sm:$0xf]
    %v692 = vld [vmem:[#allocation5 + $0xac] sm:$0xf]
    %v693 = vld [vmem:[#allocation5 + $0xb0] sm:$0xf]
    %v694 = vld [vmem:[#allocation5 + $0xb4] sm:$0xf]
    %v695 = vld [vmem:[#allocation5 + $0xb8] sm:$0xf]
    %v696 = vld [vmem:[#allocation5 + $0xbc] sm:$0xf]
    %v697 = vld [vmem:[#allocation5 + $0xc0] sm:$0xf]
    %v698 = vld [vmem:[#allocation5 + $0xc4] sm:$0xf]
    %v699 = vld [vmem:[#allocation5 + $0xc8] sm:$0xf]
    %v700 = vld [vmem:[#allocation5 + $0xcc] sm:$0xf]
    %v701 = vld [vmem:[#allocation5 + $0xd0] sm:$0xf]
    %v702 = vld [vmem:[#allocation5 + $0xd4] sm:$0xf]
    %v703 = vld [vmem:[#allocation5 + $0xd8] sm:$0xf]
    %v704 = vld [vmem:[#allocation5 + $0xdc] sm:$0xf]
    %v705 = vld [vmem:[#allocation5 + $0xe0] sm:$0xf]
    %v706 = vld [vmem:[#allocation5 + $0xe4] sm:$0xf]
    %v707 = vld [vmem:[#allocation5 + $0xe8] sm:$0xf]
    %v708 = vld [vmem:[#allocation5 + $0xec] sm:$0xf]
    %v709 = vld [vmem:[#allocation5 + $0xf0] sm:$0xf]
    %v710 = vld [vmem:[#allocation5 + $0xf4] sm:$0xf]
    %v711 = vld [vmem:[#allocation5 + $0xf8] sm:$0xf]
    %v712 = vld [vmem:[#allocation5 + $0xfc] sm:$0xf]
    %v713 = vld [vmem:[#allocation5 + $0x100] sm:$0xf]
    %v714 = vld [vmem:[#allocation5 + $0x104] sm:$0xf]
    %v715 = vld [vmem:[#allocation5 + $0x108] sm:$0xf]
    %v716 = vld [vmem:[#allocation5 + $0x10c] sm:$0xf]
    %v717 = vld [vmem:[#allocation5 + $0x110] sm:$0xf]
    %v718 = vld [vmem:[#allocation5 + $0x114] sm:$0xf]
    %v719 = vld [vmem:[#allocation5 + $0x118] sm:$0xf]
    %v720 = vld [vmem:[#allocation5 + $0x11c] sm:$0xf]
    %v721 = vld [vmem:[#allocation5 + $0x120] sm:$0xf]
    %v722 = vld [vmem:[#allocation5 + $0x124] sm:$0xf]
    %v723 = vld [vmem:[#allocation5 + $0x128] sm:$0xf]
    %v724 = vld [vmem:[#allocation5 + $0x12c] sm:$0xf]
    %v725 = vld [vmem:[#allocation5 + $0x130] sm:$0xf]
    %v726 = vld [vmem:[#allocation5 + $0x134] sm:$0xf]
    %v727 = vld [vmem:[#allocation5 + $0x138] sm:$0xf]
    %v728 = vld [vmem:[#allocation5 + $0x13c] sm:$0xf]
    %v729 = vld [vmem:[#allocation5 + $0x140] sm:$0xf]
    %v730 = vld [vmem:[#allocation5 + $0x144] sm:$0xf]
    %v731 = vld [vmem:[#allocation5 + $0x148] sm:$0xf]
    %v732 = vld [vmem:[#allocation5 + $0x14c] sm:$0xf]
    %v733 = vld [vmem:[#allocation5 + $0x150] sm:$0xf]
    %v734 = vld [vmem:[#allocation5 + $0x154] sm:$0xf]
    %v735 = vld [vmem:[#allocation5 + $0x158] sm:$0xf]
    %v736 = vld [vmem:[#allocation5 + $0x15c] sm:$0xf]
    %v737 = vld [vmem:[#allocation5 + $0x160] sm:$0xf]
    %v738 = vld [vmem:[#allocation5 + $0x164] sm:$0xf]
    %v739 = vld [vmem:[#allocation5 + $0x168] sm:$0xf]
    %v740 = vld [vmem:[#allocation5 + $0x16c] sm:$0xf]
    %v741 = vld [vmem:[#allocation5 + $0x170] sm:$0xf]
    %v742 = vld [vmem:[#allocation5 + $0x174] sm:$0xf]
    %v743 = vld [vmem:[#allocation5 + $0x178] sm:$0xf]
    %v744 = vld [vmem:[#allocation5 + $0x17c] sm:$0xf]
    %v745 = vld [vmem:[%s5] sm:$0x1]
    %v747 = vlaneseq
    %v748 = vshrl.u32 %v747, 7
    %v749 = vsub.s32 0, %v748
    %v750 = vrot.slane %v745, %v749
    %v764 = vunpack.c.l.b16 %v637
    %v765 = vunpack.c.l.b16 %v638
    %v766 = vunpack.c.l.b16 %v639
    %v767 = vunpack.c.l.b16 %v640
    %v768 = vunpack.c.l.b16 %v641
    %v769 = vunpack.c.l.b16 %v642
    %v770 = vunpack.c.l.b16 %v643
    %v771 = vunpack.c.l.b16 %v644
    %v772 = vunpack.c.l.b16 %v645
    %v773 = vunpack.c.l.b16 %v646
    %v774 = vunpack.c.l.b16 %v647
    %v775 = vunpack.c.l.b16 %v648
    %vm776 = vcmask 1041409
    %v777 = vsel %vm776, %v770, %v764
    %v778 = vsel %vm776, %v771, %v765
    %v779 = vsel %vm776, %v772, %v766
    %v780 = vsel %vm776, %v773, %v767
    %v781 = vsel %vm776, %v774, %v768
    %v782 = vsel %vm776, %v775, %v769
    %v783 = vpack.c.b16 %v777, %v777
    %v784 = vpack.c.b16 %v778, %v778
    %v785 = vpack.c.b16 %v779, %v779
    %v786 = vpack.c.b16 %v780, %v780
    %v787 = vpack.c.b16 %v781, %v781
    %v788 = vpack.c.b16 %v782, %v782
    %v891 = vunpack.c.l.b16 %v649
    %v892 = vunpack.c.l.b16 %v650
    %v893 = vunpack.c.l.b16 %v651
    %v894 = vunpack.c.l.b16 %v652
    %v895 = vunpack.c.l.b16 %v653
    %v896 = vunpack.c.l.b16 %v654
    %v897 = vunpack.c.l.b16 %v655
    %v898 = vunpack.c.l.b16 %v656
    %v899 = vunpack.c.l.b16 %v657
    %v900 = vunpack.c.l.b16 %v658
    %v901 = vunpack.c.l.b16 %v659
    %v902 = vunpack.c.l.b16 %v660
    %v903 = vunpack.c.l.b16 %v661
    %v904 = vunpack.c.l.b16 %v662
    %v905 = vunpack.c.l.b16 %v663
    %v906 = vunpack.c.l.b16 %v664
    %v907 = vunpack.c.l.b16 %v665
    %v908 = vunpack.c.l.b16 %v666
    %v909 = vunpack.c.l.b16 %v667
    %v910 = vunpack.c.l.b16 %v668
    %v911 = vunpack.c.l.b16 %v669
    %v912 = vunpack.c.l.b16 %v670
    %v913 = vunpack.c.l.b16 %v671
    %v914 = vunpack.c.l.b16 %v672
    %v915 = vunpack.c.l.b16 %v673
    %v916 = vunpack.c.l.b16 %v674
    %v917 = vunpack.c.l.b16 %v675
    %v918 = vunpack.c.l.b16 %v676
    %v919 = vunpack.c.l.b16 %v677
    %v920 = vunpack.c.l.b16 %v678
    %v921 = vunpack.c.l.b16 %v679
    %v922 = vunpack.c.l.b16 %v680
    %v923 = vunpack.c.l.b16 %v681
    %v924 = vunpack.c.l.b16 %v682
    %v925 = vunpack.c.l.b16 %v683
    %v926 = vunpack.c.l.b16 %v684
    %v927 = vunpack.c.l.b16 %v685
    %v928 = vunpack.c.l.b16 %v686
    %v929 = vunpack.c.l.b16 %v687
    %v930 = vunpack.c.l.b16 %v688
    %v931 = vunpack.c.l.b16 %v689
    %v932 = vunpack.c.l.b16 %v690
    %v933 = vunpack.c.l.b16 %v691
    %v934 = vunpack.c.l.b16 %v692
    %v935 = vunpack.c.l.b16 %v693
    %v936 = vunpack.c.l.b16 %v694
    %v937 = vunpack.c.l.b16 %v695
    %v938 = vunpack.c.l.b16 %v696
    %v939 = vunpack.c.l.b16 %v697
    %v940 = vunpack.c.l.b16 %v698
    %v941 = vunpack.c.l.b16 %v699
    %v942 = vunpack.c.l.b16 %v700
    %v943 = vunpack.c.l.b16 %v701
    %v944 = vunpack.c.l.b16 %v702
    %v945 = vunpack.c.l.b16 %v703
    %v946 = vunpack.c.l.b16 %v704
    %v947 = vunpack.c.l.b16 %v705
    %v948 = vunpack.c.l.b16 %v706
    %v949 = vunpack.c.l.b16 %v707
    %v950 = vunpack.c.l.b16 %v708
    %v951 = vunpack.c.l.b16 %v709
    %v952 = vunpack.c.l.b16 %v710
    %v953 = vunpack.c.l.b16 %v711
    %v954 = vunpack.c.l.b16 %v712
    %v955 = vunpack.c.l.b16 %v713
    %v956 = vunpack.c.l.b16 %v714
    %v957 = vunpack.c.l.b16 %v715
    %v958 = vunpack.c.l.b16 %v716
    %v959 = vunpack.c.l.b16 %v717
    %v960 = vunpack.c.l.b16 %v718
    %v961 = vunpack.c.l.b16 %v719
    %v962 = vunpack.c.l.b16 %v720
    %v963 = vunpack.c.l.b16 %v721
    %v964 = vunpack.c.l.b16 %v722
    %v965 = vunpack.c.l.b16 %v723
    %v966 = vunpack.c.l.b16 %v724
    %v967 = vunpack.c.l.b16 %v725
    %v968 = vunpack.c.l.b16 %v726
    %v969 = vunpack.c.l.b16 %v727
    %v970 = vunpack.c.l.b16 %v728
    %v971 = vunpack.c.l.b16 %v729
    %v972 = vunpack.c.l.b16 %v730
    %v973 = vunpack.c.l.b16 %v731
    %v974 = vunpack.c.l.b16 %v732
    %v975 = vunpack.c.l.b16 %v733
    %v976 = vunpack.c.l.b16 %v734
    %v977 = vunpack.c.l.b16 %v735
    %v978 = vunpack.c.l.b16 %v736
    %v979 = vunpack.c.l.b16 %v737
    %v980 = vunpack.c.l.b16 %v738
    %v981 = vunpack.c.l.b16 %v739
    %v982 = vunpack.c.l.b16 %v740
    %v983 = vunpack.c.l.b16 %v741
    %v984 = vunpack.c.l.b16 %v742
    %v985 = vunpack.c.l.b16 %v743
    %v986 = vunpack.c.l.b16 %v744
    %v987 = vpack.c.b16 %v892, %v891
    %v988 = vpack.c.b16 %v894, %v893
    %v989 = vpack.c.b16 %v896, %v895
    %v990 = vpack.c.b16 %v898, %v897
    %v991 = vpack.c.b16 %v900, %v899
    %v992 = vpack.c.b16 %v902, %v901
    %v993 = vpack.c.b16 %v904, %v903
    %v994 = vpack.c.b16 %v906, %v905
    %v995 = vpack.c.b16 %v908, %v907
    %v996 = vpack.c.b16 %v910, %v909
    %v997 = vpack.c.b16 %v912, %v911
    %v998 = vpack.c.b16 %v914, %v913
    %v999 = vpack.c.b16 %v916, %v915
    %v1000 = vpack.c.b16 %v918, %v917
    %v1001 = vpack.c.b16 %v920, %v919
    %v1002 = vpack.c.b16 %v922, %v921
    %v1003 = vpack.c.b16 %v924, %v923
    %v1004 = vpack.c.b16 %v926, %v925
    %v1005 = vpack.c.b16 %v928, %v927
    %v1006 = vpack.c.b16 %v930, %v929
    %v1007 = vpack.c.b16 %v932, %v931
    %v1008 = vpack.c.b16 %v934, %v933
    %v1009 = vpack.c.b16 %v936, %v935
    %v1010 = vpack.c.b16 %v938, %v937
    %v1011 = vpack.c.b16 %v940, %v939
    %v1012 = vpack.c.b16 %v942, %v941
    %v1013 = vpack.c.b16 %v944, %v943
    %v1014 = vpack.c.b16 %v946, %v945
    %v1015 = vpack.c.b16 %v948, %v947
    %v1016 = vpack.c.b16 %v950, %v949
    %v1017 = vpack.c.b16 %v952, %v951
    %v1018 = vpack.c.b16 %v954, %v953
    %v1019 = vpack.c.b16 %v956, %v955
    %v1020 = vpack.c.b16 %v958, %v957
    %v1021 = vpack.c.b16 %v960, %v959
    %v1022 = vpack.c.b16 %v962, %v961
    %v1023 = vpack.c.b16 %v964, %v963
    %v1024 = vpack.c.b16 %v966, %v965
    %v1025 = vpack.c.b16 %v968, %v967
    %v1026 = vpack.c.b16 %v970, %v969
    %v1027 = vpack.c.b16 %v972, %v971
    %v1028 = vpack.c.b16 %v974, %v973
    %v1029 = vpack.c.b16 %v976, %v975
    %v1030 = vpack.c.b16 %v978, %v977
    %v1031 = vpack.c.b16 %v980, %v979
    %v1032 = vpack.c.b16 %v982, %v981
    %v1033 = vpack.c.b16 %v984, %v983
    %v1034 = vpack.c.b16 %v986, %v985
    %1083 = vmatprep.subr.bf16.mxu0 0
    %1084 = vmatpush1.bf16.msra.mxu0 %v994
    %1085 = vmatprep.subr.bf16.mxu0 0
    %1086 = vmatpush1.bf16.msra.mxu0 %v993
    %1087 = vmatprep.subr.bf16.mxu0 0
    %1088 = vmatpush1.bf16.msra.mxu0 %v992
    %1089 = vmatprep.subr.bf16.mxu0 0
    %1090 = vmatpush1.bf16.msra.mxu0 %v991
    %1091 = vmatprep.subr.bf16.mxu0 0
    %1092 = vmatpush1.bf16.msra.mxu0 %v990
    %1093 = vmatprep.subr.bf16.mxu0 0
    %1094 = vmatpush1.bf16.msra.mxu0 %v989
    %1095 = vmatprep.subr.bf16.mxu0 0
    %1096 = vmatpush1.bf16.msra.mxu0 %v988
    %1097 = vmatprep.subr.bf16.mxu0 0
    %1098 = vmatpush1.bf16.msra.mxu0 %v987
    %1099 = vmatprep.subr.bf16.mxu0 0
    %1100 = vmatpush2.bf16.msra.mxu0 %v1002
    %1101 = vmatprep.subr.bf16.mxu0 0
    %1102 = vmatpush2.bf16.msra.mxu0 %v1001
    %1103 = vmatprep.subr.bf16.mxu0 0
    %1104 = vmatpush2.bf16.msra.mxu0 %v1000
    %1105 = vmatprep.subr.bf16.mxu0 0
    %1106 = vmatpush2.bf16.msra.mxu0 %v999
    %1107 = vmatprep.subr.bf16.mxu0 0
    %1108 = vmatpush2.bf16.msra.mxu0 %v998
    %1109 = vmatprep.subr.bf16.mxu0 0
    %1110 = vmatpush2.bf16.msra.mxu0 %v997
    %1111 = vmatprep.subr.bf16.mxu0 0
    %1112 = vmatpush2.bf16.msra.mxu0 %v996
    %1113 = vmatprep.subr.bf16.mxu0 0
    %1114 = vmatpush2.bf16.msra.mxu0 %v995
    %1115 = vmatprep.mubr.bf16.mxu0 %v784
    %1116 = vmatmul.mubr.bf16.gmra.mxu0 %v783
    %v1117 = vpop.f32.mrf.mxu0
    %v1118 = vadd.f32 %v750, %v1117
    %v1119 = vpop.f32.mrf.mxu0
    %v1120 = vpop.f32.mrf.mxu0
    %v1121 = vpop.f32.mrf.mxu0
    %1122 = vdwg.mxu0
    %1123 = vmatprep.subr.bf16.mxu0 0
    %1124 = vmatpush1.bf16.msra.mxu0 %v1010
    %1125 = vmatprep.subr.bf16.mxu0 0
    %1126 = vmatpush1.bf16.msra.mxu0 %v1009
    %1127 = vmatprep.subr.bf16.mxu0 0
    %1128 = vmatpush1.bf16.msra.mxu0 %v1008
    %1129 = vmatprep.subr.bf16.mxu0 0
    %1130 = vmatpush1.bf16.msra.mxu0 %v1007
    %1131 = vmatprep.subr.bf16.mxu0 0
    %1132 = vmatpush1.bf16.msra.mxu0 %v1006
    %1133 = vmatprep.subr.bf16.mxu0 0
    %1134 = vmatpush1.bf16.msra.mxu0 %v1005
    %1135 = vmatprep.subr.bf16.mxu0 0
    %1136 = vmatpush1.bf16.msra.mxu0 %v1004
    %1137 = vmatprep.subr.bf16.mxu0 0
    %1138 = vmatpush1.bf16.msra.mxu0 %v1003
    %1139 = vmatprep.subr.bf16.mxu0 0
    %1140 = vmatpush2.bf16.msra.mxu0 %v1018
    %1141 = vmatprep.subr.bf16.mxu0 0
    %1142 = vmatpush2.bf16.msra.mxu0 %v1017
    %1143 = vmatprep.subr.bf16.mxu0 0
    %1144 = vmatpush2.bf16.msra.mxu0 %v1016
    %1145 = vmatprep.subr.bf16.mxu0 0
    %1146 = vmatpush2.bf16.msra.mxu0 %v1015
    %1147 = vmatprep.subr.bf16.mxu0 0
    %1148 = vmatpush2.bf16.msra.mxu0 %v1014
    %1149 = vmatprep.subr.bf16.mxu0 0
    %1150 = vmatpush2.bf16.msra.mxu0 %v1013
    %1151 = vmatprep.subr.bf16.mxu0 0
    %1152 = vmatpush2.bf16.msra.mxu0 %v1012
    %1153 = vmatprep.subr.bf16.mxu0 0
    %1154 = vmatpush2.bf16.msra.mxu0 %v1011
    %1155 = vmatprep.mubr.bf16.mxu0 %v786
    %1156 = vmatmul.mubr.bf16.gmra.mxu0 %v785
    %v1157 = vpop.f32.mrf.mxu0
    %v1158 = vadd.f32 %v1118, %v1157
    %v1159 = vpop.f32.mrf.mxu0
    %v1160 = vpop.f32.mrf.mxu0
    %v1161 = vpop.f32.mrf.mxu0
    %1162 = vdwg.mxu0
    %1163 = vmatprep.subr.bf16.mxu0 0
    %1164 = vmatpush1.bf16.msra.mxu0 %v1026
    %1165 = vmatprep.subr.bf16.mxu0 0
    %1166 = vmatpush1.bf16.msra.mxu0 %v1025
    %1167 = vmatprep.subr.bf16.mxu0 0
    %1168 = vmatpush1.bf16.msra.mxu0 %v1024
    %1169 = vmatprep.subr.bf16.mxu0 0
    %1170 = vmatpush1.bf16.msra.mxu0 %v1023
    %1171 = vmatprep.subr.bf16.mxu0 0
    %1172 = vmatpush1.bf16.msra.mxu0 %v1022
    %1173 = vmatprep.subr.bf16.mxu0 0
    %1174 = vmatpush1.bf16.msra.mxu0 %v1021
    %1175 = vmatprep.subr.bf16.mxu0 0
    %1176 = vmatpush1.bf16.msra.mxu0 %v1020
    %1177 = vmatprep.subr.bf16.mxu0 0
    %1178 = vmatpush1.bf16.msra.mxu0 %v1019
    %1179 = vmatprep.subr.bf16.mxu0 0
    %1180 = vmatpush2.bf16.msra.mxu0 %v1034
    %1181 = vmatprep.subr.bf16.mxu0 0
    %1182 = vmatpush2.bf16.msra.mxu0 %v1033
    %1183 = vmatprep.subr.bf16.mxu0 0
    %1184 = vmatpush2.bf16.msra.mxu0 %v1032
    %1185 = vmatprep.subr.bf16.mxu0 0
    %1186 = vmatpush2.bf16.msra.mxu0 %v1031
    %1187 = vmatprep.subr.bf16.mxu0 0
    %1188 = vmatpush2.bf16.msra.mxu0 %v1030
    %1189 = vmatprep.subr.bf16.mxu0 0
    %1190 = vmatpush2.bf16.msra.mxu0 %v1029
    %1191 = vmatprep.subr.bf16.mxu0 0
    %1192 = vmatpush2.bf16.msra.mxu0 %v1028
    %1193 = vmatprep.subr.bf16.mxu0 0
    %1194 = vmatpush2.bf16.msra.mxu0 %v1027
    %1195 = vmatprep.mubr.bf16.mxu0 %v788
    %1196 = vmatmul.mubr.bf16.gmra.mxu0 %v787
    %v1197 = vpop.f32.mrf.mxu0
    %v1198 = vadd.f32 %v1158, %v1197
    %v1199 = vpop.f32.mrf.mxu0
    %v1200 = vpop.f32.mrf.mxu0
    %v1201 = vpop.f32.mrf.mxu0
    %1202 = vdwg.mxu0
    %1203 = vst [vmem:[#allocation7] sm:$0x3] %v1198
    // Predicated region
    $region34: #{tpu_custom_call.1} parent=1 // pred_check
      _
    $region35: #{tpu_custom_call.1} parent=1 // pred_check_branch
      %1205 = sbr.rel (0) target = $region37
    $region36: #{tpu_custom_call.1} parent=1 // pred_region
      %s1207 = ssub.s32 32, 32
      %1208 = vsyncadd [#allocation4], %s1207
      %s1210 = sshll.u32 [#allocation7], 4
      %s1211 = int_to_ptr.vmem [resolvable:$true] %s1210
      %1213 = dma.vmem_to_hbm [thread:$0]  %s1211, 32, %s6, [#allocation4]
    $region37: #{tpu_custom_call.1} parent=1 // pred_fallthru
      _
    // Predicated region
    $region38: #{tpu_custom_call.1} parent=1 // pred_check
      _
    $region39: #{tpu_custom_call.1} parent=1 // pred_check_branch
      %1215 = sbr.rel (0) target = $region41
    $region40: #{tpu_custom_call.1} parent=1 // pred_region
      %1216 = dma.done [#allocation4], 32
    $region41: #{tpu_custom_call.1} parent=1 // pred_fallthru
      _
    %1217 = vsyncpa [#allocation3], 1
    %1218 = vsyncpa [#allocation6], 1
    %1219 = vsyncpa [#allocation4], 1

</llo_original>
